<compile_context>
chip_gen: v6e
topology: v6e:2x2x1
jax: 0.10.0
libtpu: 0.0.40
codegen_flags: <defaults>
</compile_context>

<pallas_src>
import jax
import jax.numpy as jnp
from jax.experimental import pallas as pl
from jax.experimental.pallas import tpu as pltpu


_LANE = 128


def _spatial_attn_kernel(w_ref, x_ref, o_ref):
    # w_ref: (1, C)        squeeze-conv weight (nn.Conv2d(C, 1, 1, bias=False)), in x's dtype
    # x_ref: (C, TILE_HW)  one (batch, spatial-tile) slab, native dtype
    # o_ref: (C, TILE_HW)
    x = x_ref[...]                                                   # native dtype
    # 1x1 conv with out_channels=1 == weighted channel sum -> MXU dot, f32 accumulation.
    # (For very small C on v5e an unrolled VPU accumulation would avoid the M=1 matmul,
    #  but compute here is hidden under HBM bandwidth, so we keep the simple MXU path.)
    z = jnp.dot(w_ref[...], x, preferred_element_type=jnp.float32)   # (1, TILE_HW)
    z = jax.nn.sigmoid(z)                                            # f32, EUP
    # broadcast multiply over C in the input dtype
    o_ref[...] = (x * z.astype(x.dtype)).astype(o_ref.dtype)


def _vmem_capacity_bytes():
    try:
        return int(pltpu.get_tpu_info().vmem_capacity_bytes)
    except Exception:
        return 64 << 20  # conservative fallback (v7x physical VMEM)


def _pick_tile_hw(C, HW, N, dtype):
    """Byte-targeted spatial tile: ~4 MiB per (C_pad, TILE_HW) buffer, 128-lane aligned."""
    itemsize = jnp.dtype(dtype).itemsize
    # sublane packing: f32 pads C to a multiple of 8, bf16 to 16, int8 to 32
    pack = 8 * max(1, 4 // itemsize)
    c_pad = pl.cdiv(C, pack) * pack
    col_bytes = c_pad * itemsize                      # bytes per lane-column of a tile

    vmem_cap = _vmem_capacity_bytes()
    # 4 live (C_pad, TILE_HW) buffers (in + out, double-buffered) within half of VMEM;
    # ~2-4 MiB per buffer already reaches ~85%+ of the HBM roofline.
    per_buf_cap = max(_LANE * col_bytes, (vmem_cap // 2) // 4)
    target_buf = min(4 << 20, per_buf_cap)

    hw_aligned = pl.cdiv(HW, _LANE) * _LANE
    tile = min(target_buf // col_bytes, hw_aligned)
    tile = max(_LANE, (tile // _LANE) * _LANE)

    # Keep enough grid steps that v7x's two TensorCores can both be fed.
    min_steps = 8
    while tile > _LANE and N * pl.cdiv(HW, tile) < min_steps:
        tile = max(_LANE, ((tile // 2) // _LANE) * _LANE)

    tile_bytes = c_pad * tile * itemsize
    return tile, tile_bytes, vmem_cap


def spatial_attention_2d(x_nchw, weight):
    """x_nchw: (N, C, H, W); weight: (1, C) == conv weight (1, C, 1, 1) squeezed."""
    N, C, H, W = x_nchw.shape
    HW = H * W

    tile_hw, tile_bytes, vmem_cap = _pick_tile_hw(C, HW, N, x_nchw.dtype)
    n_tiles = pl.cdiv(HW, tile_hw)

    x_flat = x_nchw.reshape(N, C, HW)
    # Hoist the weight cast out of the kernel (done once, not per grid step). The dot
    # still accumulates in f32; minor divergence vs. an f32-weight reference only when
    # x is bf16 (the MXU takes bf16 inputs regardless).
    w = weight.astype(x_nchw.dtype)

    # VMEM limit consistent with actual usage: 4 double-buffered tiles + slack,
    # clamped to physical capacity (raises v5e's 16 MiB default only when needed).
    vmem_limit = int(min(vmem_cap, max(4 * tile_bytes + (2 << 20), 16 << 20)))

    out_flat = pl.pallas_call(
        _spatial_attn_kernel,
        out_shape=jax.ShapeDtypeStruct((N, C, HW), x_nchw.dtype),
        grid_spec=pltpu.PrefetchScalarGridSpec(
            num_scalar_prefetch=0,
            grid=(N, n_tiles),
            in_specs=[
                # tiny weight: full untiled block, constant index -> stays resident
                pl.BlockSpec((1, C), lambda n, s: (0, 0)),
                # x: squeeze the unit batch dim, tile the spatial (lane) axis;
                # the ragged last spatial block (if any) is masked by Pallas.
                pl.BlockSpec((None, C, tile_hw), lambda n, s: (n, 0, s)),
            ],
            out_specs=pl.BlockSpec((None, C, tile_hw), lambda n, s: (n, 0, s)),
        ),
        compiler_params=pltpu.CompilerParams(
            dimension_semantics=("parallel", "parallel"),
            vmem_limit_bytes=vmem_limit,
        ),
    )(w, x_flat)

    return out_flat.reshape(N, C, H, W)


if __name__ == "__main__":
    # Small deterministic example consistent with the module's forward.
    N, C, H, W = 2, 4, 16, 16
    key = jax.random.PRNGKey(0)
    kx, kw = jax.random.split(key)

    x = jax.random.normal(kx, (N, C, H, W), dtype=jnp.float32)
    # nn.Conv2d(channel, 1, kernel_size=1, bias=False).weight has shape (1, C, 1, 1);
    # we store it squeezed as (1, C).
    bound = 1.0 / jnp.sqrt(jnp.float32(C))
    weight = jax.random.uniform(kw, (1, C), dtype=jnp.float32,
                                minval=-bound, maxval=bound)

    out = spatial_attention_2d(x, weight)
    out = jax.block_until_ready(out)

    # Pure-JAX reference for correctness.
    z_ref = jax.nn.sigmoid(jnp.einsum("nchw,oc->nohw", x, weight))  # (N, 1, H, W)
    ref = x * z_ref
    assert out.shape == (N, C, H, W)
    assert jnp.allclose(out, ref, atol=1e-5, rtol=1e-5), "mismatch vs reference"

    print("KERNEL_OK")
</pallas_src>

<mosaic_0001>
module attributes {stable_mosaic.version = 11 : i64} {
  func.func @_spatial_attn_kernel(%arg0: i32, %arg1: i32, %arg2: memref<1x4xf32, #tpu.memory_space<vmem>>, %arg3: memref<1x4x128xf32, #tpu.memory_space<vmem>>, %arg4: memref<1x4x128xf32, #tpu.memory_space<vmem>>) attributes {dimension_semantics = [#tpu.dimension_semantics<parallel>, #tpu.dimension_semantics<parallel>], iteration_bounds = array<i64: 2, 2>, scalar_prefetch = 0 : i64, scratch_operands = 0 : i64, tpu.core_type = #tpu.core_type<tc>, window_params = [{pipeline_mode = #tpu.pipeline_mode<synchronous>, transform_indices = @transform_0, window_bounds = array<i64: 1, 4>}, {transform_indices = @transform_1, window_bounds = array<i64: 1, 4, 128>}, {transform_indices = @transform_2, window_bounds = array<i64: 1, 4, 128>}]} {
    %c0 = arith.constant 0 : index
    %c0_0 = arith.constant 0 : index
    %c0_1 = arith.constant 0 : index
    %0 = vector.load %arg3[%c0, %c0_0, %c0_1] : memref<1x4x128xf32, #tpu.memory_space<vmem>>, vector<1x4x128xf32>
    %1 = vector.shape_cast %0 : vector<1x4x128xf32> to vector<4x128xf32>
    %c0_2 = arith.constant 0 : index
    %c0_3 = arith.constant 0 : index
    %2 = vector.load %arg2[%c0_2, %c0_3] : memref<1x4xf32, #tpu.memory_space<vmem>>, vector<1x4xf32>
    %cst = arith.constant dense<0.000000e+00> : vector<1x128xf32>
    %3 = tpu.matmul %2, %1, %cst {dimension_numbers = #tpu.dot_dimension_numbers<[1], [0], [0], [1], [0, 0, 1, 1], [], []>} : vector<1x4xf32>, vector<4x128xf32>, vector<1x128xf32> -> vector<1x128xf32>
    %4 = arith.negf %3 : vector<1x128xf32>
    %5 = math.exp %4 : vector<1x128xf32>
    %cst_4 = arith.constant 1.000000e+00 : f32
    %6 = vector.broadcast %cst_4 : f32 to vector<1x128xf32>
    %7 = arith.addf %6, %5 : vector<1x128xf32>
    %8 = arith.divf %6, %7 : vector<1x128xf32>
    %9 = vector.broadcast %8 : vector<1x128xf32> to vector<4x128xf32>
    %10 = arith.mulf %1, %9 : vector<4x128xf32>
    %c0_5 = arith.constant 0 : index
    %c0_6 = arith.constant 0 : index
    %c0_7 = arith.constant 0 : index
    %11 = vector.load %arg4[%c0_5, %c0_6, %c0_7] : memref<1x4x128xf32, #tpu.memory_space<vmem>>, vector<1x4x128xf32>
    %12 = vector.shape_cast %11 : vector<1x4x128xf32> to vector<4x128xf32>
    %13 = vector.shape_cast %10 : vector<4x128xf32> to vector<1x4x128xf32>
    tpu.vector_store %arg4[%c0_5, %c0_6, %c0_7], %13 {strides = array<i32>} : memref<1x4x128xf32, #tpu.memory_space<vmem>>, vector<1x4x128xf32>,
    return
  }
  func.func @transform_0(%arg0: i32, %arg1: i32) -> (i32, i32) {
    %c0_i32 = arith.constant 0 : i32
    %c0_i32_0 = arith.constant 0 : i32
    %c0_i32_1 = arith.constant 0 : i32
    return %c0_i32, %c0_i32_0 : i32, i32
  }
  func.func @transform_1(%arg0: i32, %arg1: i32) -> (i32, i32, i32) {
    %c0_i32 = arith.constant 0 : i32
    %c0_i32_0 = arith.constant 0 : i32
    return %arg0, %c0_i32, %arg1 : i32, i32, i32
  }
  func.func @transform_2(%arg0: i32, %arg1: i32) -> (i32, i32, i32) {
    %c0_i32 = arith.constant 0 : i32
    %c0_i32_0 = arith.constant 0 : i32
    return %arg0, %c0_i32, %arg1 : i32, i32, i32
  }
}

</mosaic_0001>

<llo_original>
// kernel: tpu_custom_call.1
$region0: #{tpu_custom_call.1}
  #allocation0 [shape = 'u32[]', space=smem, size = 0x4, offset = 0x4, fixed_abs, tag = 'smem constant byte address 0x4 - core index']
  #allocation1 [shape = 'u32[144,128]{1,0:T(1,128)}', space=vmem, size = 0x12000, scoped, tag = 'internal scratch']
  %s0 = inlined_call_operand.hbm [shape: f32[1,4], index: 0, kind: input, shape index: {}]
  %s1 = inlined_call_operand.hbm [shape: f32[2,4,256], index: 1, kind: input, shape index: {}]
  %s2 = inlined_call_operand.hbm [shape: f32[2,4,256], index: 2, kind: output, shape index: {}]
  %s3 = sld [smem:[#allocation0]]
  $region49: #{tpu_custom_call.1} parent=0
    _
  %s5 = ssub.s32 1, %s3
  %s6 = scalar_select 0, %s5, %s3
  $region1: #{tpu_custom_call.1} parent=0
    #allocation2 [shape = 'u8[512]{0}', space=vmem, size = 0x400, scoped, tag = 'input window, operand 0, single buffered']
    #allocation3 [shape = 's32[2]{0}', space=sflag, size = 0x8, scoped, tag = 'scoped memory for tpu_custom_call.1']
    #allocation4 [shape = 's32[2]{0}', space=sflag, size = 0x8, scoped, tag = 'scoped memory for tpu_custom_call.1']
    #allocation5 [shape = 'u8[4096]{0}', space=vmem, size = 0x1000, scoped, tag = 'input window, operand 1']
    #allocation6 [shape = 's32[2]{0}', space=sflag, size = 0x8, scoped, tag = 'scoped memory for tpu_custom_call.1']
    #allocation7 [shape = 'u8[4096]{0}', space=vmem, size = 0x1000, scoped, tag = 'output window, operand 0']
    %7 = vsyncpa [#allocation3], 0
    %8 = vsyncpa [#allocation6], 0
    %s9 = scalar_lea.sflag [#allocation6], 1
    %10 = vsyncpa %s9, 0
    %11 = vsyncpa [#allocation4], 0
    %s12 = scalar_lea.sflag [#allocation4], 1
    %13 = vsyncpa %s12, 0
    loop: start=0, step=1, limit=6
    $region2: #{tpu_custom_call.1} parent=1 // loop_pre_header
      _
    $region3: #{tpu_custom_call.1} parent=1 // loop_header
      %s15 = sphi 0, %s19
      %p16 = scmp.ge.s32.totalorder %s15, 6
      %s22 = sphi 0, %s34
      %s23 = sphi 0, %s30
      %s24 = sphi 0, %s22
      %s25 = sphi 0, %s23
      %s26 = sphi 0, %s24
      %s27 = sphi 0, %s25
      %s35 = sphi 0, %s35
      %s37 = sphi 0, %s35
      %s38 = sphi 0, %s37
      %s52 = sphi 0, %s38
      %s60 = sphi 0, %s62
      %s63 = sphi 0, %s60
      %s64 = sphi 0, %s63
      %s80 = sphi 0, %s64
      %s88 = sphi 0, %s90
      %s91 = sphi 0, %s88
      %s92 = sphi 0, %s91
      %s108 = sphi 0, %s92
    $region4: #{tpu_custom_call.1} parent=1 // loop_header_branch
      %18 = sbr.rel (%p16) target = $region8
    $region5: #{tpu_custom_call.1} parent=1 // loop_body
      %s20 = ssub.s32 %s15, 1
      %s21 = ssub.s32 %s15, 2
      %s28 = sadd.s32 1, %s23
      %p29 = scmp.ge.s32.totalorder %s28, 2
      %s30 = scalar_select %p29, 0, %s28
      %s31 = sadd.s32 1, %s22
      %s32 = scalar_select %p29, %s31, %s22
      %p33 = scmp.ge.s32.totalorder %s32, 2
      %s34 = scalar_select %p33, 0, %s32
      %s36 = sadd.s32 %s35, 1
      %p39 = scmp.eq.s32.totalorder %s15, 3
      %p40 = scmp.ne.s32.totalorder %s35, %s37
      %p41 = scmp.eq.s32.totalorder %s15, 0
      %p42 = por %p40, %p41
      %p43 = scmp.ne.s32.totalorder %s35, %s37
      %p44 = scmp.eq.s32.totalorder %s20, 3
      %p45 = por %p43, %p44
      %p46 = scmp.ne.s32.totalorder %s37, %s38
      %p47 = scmp.eq.s32.totalorder %s20, 0
      %p48 = por %p46, %p47
      %p49 = scmp.ne.s32.totalorder %s37, %s38
      %p50 = scmp.eq.s32.totalorder %s21, 3
      %p51 = por %p49, %p50
      %p53 = scmp.ne.s32.totalorder %s38, %s52
      %p54 = scmp.eq.s32.totalorder %s21, 0
      %p55 = por %p53, %p54
      %s56 = ssub.s32 %s22, %s34
      %s57 = ssub.s32 %s23, %s30
      %s58 = sor.u32 %s56, %s57
      %p59 = scmp.eq.s32.totalorder %s58, 0
      %s61 = sadd.s32 %s60, 1
      %s62 = scalar_select %p59, %s60, %s61
      %p65 = pneg %p59
      %p66 = scmp.eq.s32.totalorder %s15, 3
      %p67 = por %p65, %p66
      %p68 = scmp.ne.s32.totalorder %s60, %s63
      %p69 = scmp.eq.s32.totalorder %s15, 0
      %p70 = por %p68, %p69
      %p71 = scmp.ne.s32.totalorder %s60, %s63
      %p72 = scmp.eq.s32.totalorder %s20, 3
      %p73 = por %p71, %p72
      %p74 = scmp.ne.s32.totalorder %s63, %s64
      %p75 = scmp.eq.s32.totalorder %s20, 0
      %p76 = por %p74, %p75
      %p77 = scmp.ne.s32.totalorder %s63, %s64
      %p78 = scmp.eq.s32.totalorder %s21, 3
      %p79 = por %p77, %p78
      %p81 = scmp.ne.s32.totalorder %s64, %s80
      %p82 = scmp.eq.s32.totalorder %s21, 0
      %p83 = por %p81, %p82
      %s84 = ssub.s32 %s22, %s34
      %s85 = ssub.s32 %s23, %s30
      %s86 = sor.u32 %s84, %s85
      %p87 = scmp.eq.s32.totalorder %s86, 0
      %s89 = sadd.s32 %s88, 1
      %s90 = scalar_select %p87, %s88, %s89
      %p93 = pneg %p87
      %p94 = scmp.eq.s32.totalorder %s15, 3
      %p95 = por %p93, %p94
      %p96 = scmp.ne.s32.totalorder %s88, %s91
      %p97 = scmp.eq.s32.totalorder %s15, 0
      %p98 = por %p96, %p97
      %p99 = scmp.ne.s32.totalorder %s88, %s91
      %p100 = scmp.eq.s32.totalorder %s20, 3
      %p101 = por %p99, %p100
      %p102 = scmp.ne.s32.totalorder %s91, %s92
      %p103 = scmp.eq.s32.totalorder %s20, 0
      %p104 = por %p102, %p103
      %p105 = scmp.ne.s32.totalorder %s91, %s92
      %p106 = scmp.eq.s32.totalorder %s21, 3
      %p107 = por %p105, %p106
      %p109 = scmp.ne.s32.totalorder %s92, %s108
      %p110 = scmp.eq.s32.totalorder %s21, 0
      %p111 = por %p109, %p110
      %p112 = scmp.le.s32.totalorder 1, %s15
      %p113 = scmp.lt.s32.totalorder %s15, 5
      %p114 = pnand %p112, %p113
      %p115 = pneg %p114
      // Predicated region
      $region9: #{tpu_custom_call.1} parent=5 // pred_check
        _
      $region10: #{tpu_custom_call.1} parent=5 // pred_check_branch
        %117 = sbr.rel (%p114) target = $region12
      $region11: #{tpu_custom_call.1} parent=5 // pred_region
        %s118 = ssub.s32 %s15, 1
        // Predicated region
        $region13: #{tpu_custom_call.1} parent=11 // pred_check
          %p119 = pneg %p48
        $region14: #{tpu_custom_call.1} parent=11 // pred_check_branch
          %121 = sbr.rel (%p119) target = $region16
        $region15: #{tpu_custom_call.1} parent=11 // pred_region
          %s123 = ssub.s32 16, 16
          %124 = vsyncadd [#allocation3], %s123
          %s126 = sshll.u32 [#allocation2], 4
          %s127 = int_to_ptr.vmem [resolvable:$true] %s126
          %129 = dma.hbm_to_vmem [thread:$0]  %s0, 16, %s127, [#allocation3]
        $region16: #{tpu_custom_call.1} parent=11 // pred_fallthru
          _
      $region12: #{tpu_custom_call.1} parent=5 // pred_fallthru
        _
      %p130 = scmp.lt.s32.totalorder %s15, 4
      // Predicated region
      $region17: #{tpu_custom_call.1} parent=5 // pred_check
        %p131 = pneg %p130
      $region18: #{tpu_custom_call.1} parent=5 // pred_check_branch
        %133 = sbr.rel (%p131) target = $region20
      $region19: #{tpu_custom_call.1} parent=5 // pred_region
        // Predicated region
        $region21: #{tpu_custom_call.1} parent=19 // pred_check
          %p134 = pneg %p70
        $region22: #{tpu_custom_call.1} parent=19 // pred_check_branch
          %136 = sbr.rel (%p134) target = $region24
        $region23: #{tpu_custom_call.1} parent=19 // pred_region
          %s137 = sand.u32 %s60, 1
          %s138 = scalar_lea.sflag [#allocation6], %s137
          %s139 = sand.u32 %s60, 1
          %s140 = smul.addr %s139, 4
          %s141 = scalar_lea.vmem [#allocation5], %s140
          %s143 = ssub.s32 64, 64
          %144 = vsyncadd %s138, %s143
          %s145 = smul.addr %s22, 2
          %s146 = sadd.s32 %s23, %s145
          %s147 = smul.addr %s146, 64
          %s148 = scalar_lea.hbm %s1, %s147
          %s150 = sshll.u32 %s141, 4
          %s151 = int_to_ptr.vmem [resolvable:$true] %s150
          %153 = dma.hbm_to_vmem [thread:$0]  %s148, 64, %s151, %s138
        $region24: #{tpu_custom_call.1} parent=19 // pred_fallthru
          _
      $region20: #{tpu_custom_call.1} parent=5 // pred_fallthru
        _
      %p154 = scmp.le.s32.totalorder 1, %s15
      %p155 = scmp.lt.s32.totalorder %s15, 5
      %p156 = pnand %p154, %p155
      %p157 = pneg %p156
      // Predicated region
      $region25: #{tpu_custom_call.1} parent=5 // pred_check
        _
      $region26: #{tpu_custom_call.1} parent=5 // pred_check_branch
        %159 = sbr.rel (%p156) target = $region28
      $region27: #{tpu_custom_call.1} parent=5 // pred_region
        %s160 = ssub.s32 %s15, 1
        // Predicated region
        $region29: #{tpu_custom_call.1} parent=27 // pred_check
          %p161 = pneg %p48
        $region30: #{tpu_custom_call.1} parent=27 // pred_check_branch
          %163 = sbr.rel (%p161) target = $region32
        $region31: #{tpu_custom_call.1} parent=27 // pred_region
          %164 = dma.done [#allocation3], 16
        $region32: #{tpu_custom_call.1} parent=27 // pred_fallthru
          _
        %s165 = sand.u32 %s63, 1
        %s166 = scalar_lea.sflag [#allocation6], %s165
        %s167 = sand.u32 %s63, 1
        %s168 = smul.addr %s167, 4
        %s169 = scalar_lea.vmem [#allocation5], %s168
        // Predicated region
        $region33: #{tpu_custom_call.1} parent=27 // pred_check
          %p170 = pneg %p76
        $region34: #{tpu_custom_call.1} parent=27 // pred_check_branch
          %172 = sbr.rel (%p170) target = $region36
        $region35: #{tpu_custom_call.1} parent=27 // pred_region
          %173 = dma.done %s166, 64
        $region36: #{tpu_custom_call.1} parent=27 // pred_fallthru
          _
        %p174 = pneg %p48
        %p175 = pneg %p45
        %s176 = sand.u32 %s63, 1
        %s177 = scalar_lea.sflag [#allocation6], %s176
        %s178 = sand.u32 %s63, 1
        %s179 = smul.addr %s178, 4
        %s180 = scalar_lea.vmem [#allocation5], %s179
        %p181 = pneg %p76
        %p182 = pneg %p73
        %p183 = pneg %p104
        %p184 = pneg %p101
        %s185 = sand.u32 %s91, 1
        %s186 = scalar_lea.sflag [#allocation4], %s185
        %s187 = sand.u32 %s91, 1
        %s188 = smul.addr %s187, 4
        %s189 = scalar_lea.vmem [#allocation7], %s188
        %v190 = vld [vmem:[%s169] sm:$0xf]
        %v191 = vld [vmem:[#allocation2] sm:$0x1]
        %vm192 = vcmask 31744
        %v194 = vsel %vm192, %v191, 0
        %vm196 = vcmask 1043456
        %v198 = vsel %vm196, %v190, 0
        %200 = vmatprep.subr.mxu0 0.0
        %201 = vmatpush1.msra.mxu0 0.0
        %202 = vmatprep.subr.mxu0 0.0
        %203 = vmatpush1.msra.mxu0 0.0
        %204 = vmatprep.subr.mxu0 0.0
        %205 = vmatpush1.msra.mxu0 0.0
        %206 = vmatprep.subr.mxu0 0.0
        %207 = vmatpush1.msra.mxu0 0.0
        %208 = vmatprep.subr.mxu0 0.0
        %209 = vmatpush1.msra.mxu0 0.0
        %210 = vmatprep.subr.mxu0 0.0
        %211 = vmatpush1.msra.mxu0 0.0
        %212 = vmatprep.subr.mxu0 0.0
        %213 = vmatpush1.msra.mxu0 0.0
        %214 = vmatprep.subr.mxu0 0.0
        %215 = vmatpush1.msra.mxu0 0.0
        %216 = vmatprep.subr.mxu0 0.0
        %217 = vmatpush1.msra.mxu0 0.0
        %218 = vmatprep.subr.mxu0 0.0
        %219 = vmatpush1.msra.mxu0 0.0
        %220 = vmatprep.subr.mxu0 0.0
        %221 = vmatpush1.msra.mxu0 0.0
        %222 = vmatprep.subr.mxu0 0.0
        %223 = vmatpush1.msra.mxu0 0.0
        %224 = vmatprep.subr.mxu0 0.0
        %225 = vmatpush1.msra.mxu0 0.0
        %226 = vmatprep.subr.mxu0 0.0
        %227 = vmatpush1.msra.mxu0 0.0
        %228 = vmatprep.subr.mxu0 0.0
        %229 = vmatpush1.msra.mxu0 0.0
        %230 = vmatprep.subr.mxu0 0.0
        %231 = vmatpush1.msra.mxu0 %v198
        %232 = vmatprep.subr.mxu0 0.0
        %233 = vmatpush2.msra.mxu0 0.0
        %234 = vmatprep.subr.mxu0 0.0
        %235 = vmatpush2.msra.mxu0 0.0
        %236 = vmatprep.subr.mxu0 0.0
        %237 = vmatpush2.msra.mxu0 0.0
        %238 = vmatprep.subr.mxu0 0.0
        %239 = vmatpush2.msra.mxu0 0.0
        %240 = vmatprep.subr.mxu0 0.0
        %241 = vmatpush2.msra.mxu0 0.0
        %242 = vmatprep.subr.mxu0 0.0
        %243 = vmatpush2.msra.mxu0 0.0
        %244 = vmatprep.subr.mxu0 0.0
        %245 = vmatpush2.msra.mxu0 0.0
        %246 = vmatprep.subr.mxu0 0.0
        %247 = vmatpush2.msra.mxu0 0.0
        %248 = vmatprep.subr.mxu0 0.0
        %249 = vmatpush2.msra.mxu0 0.0
        %250 = vmatprep.subr.mxu0 0.0
        %251 = vmatpush2.msra.mxu0 0.0
        %252 = vmatprep.subr.mxu0 0.0
        %253 = vmatpush2.msra.mxu0 0.0
        %254 = vmatprep.subr.mxu0 0.0
        %255 = vmatpush2.msra.mxu0 0.0
        %256 = vmatprep.subr.mxu0 0.0
        %257 = vmatpush2.msra.mxu0 0.0
        %258 = vmatprep.subr.mxu0 0.0
        %259 = vmatpush2.msra.mxu0 0.0
        %260 = vmatprep.subr.mxu0 0.0
        %261 = vmatpush2.msra.mxu0 0.0
        %262 = vmatprep.subr.mxu0 0.0
        %263 = vmatpush2.msra.mxu0 0.0
        %264 = vmatprep.mubr.f32.mxu0 0.0
        %265 = vmatmul.mubr.f32.gmra.mxu0 %v194
        %v266 = vpop.f32.mrf.mxu0
        %v267 = vadd.f32 0.0, %v266
        %v268 = vpop.f32.mrf.mxu0
        %269 = vdwg.mxu0
        %v270 = vxor.u32 %v267, 2147483648
        %v271 = vmul.f32 %v270, 1.442695
        %v272 = vpow.pop %v271
        %v273 = vadd.f32 %v272, 1.0
        %v274 = vrcp.pop %v273
        %v275 = vmul.f32 1.0, %v274
        %v276 = vlaneseq
        %v277 = vshrl.u32 %v276, 7
        %v278 = vsub.s32 0, %v277
        %v279 = vrot.slane %v275, %v278
        %v280 = vmul.f32 %v190, %v279
        %281 = vst [vmem:[%s189] sm:$0xf] %v280
        %s282 = sand.u32 %s91, 1
        %s283 = scalar_lea.sflag [#allocation4], %s282
        %s284 = sand.u32 %s91, 1
        %s285 = smul.addr %s284, 4
        %s286 = scalar_lea.vmem [#allocation7], %s285
        // Predicated region
        $region37: #{tpu_custom_call.1} parent=27 // pred_check
          %p287 = pneg %p101
        $region38: #{tpu_custom_call.1} parent=27 // pred_check_branch
          %289 = sbr.rel (%p287) target = $region40
        $region39: #{tpu_custom_call.1} parent=27 // pred_region
          %s291 = ssub.s32 64, 64
          %292 = vsyncadd %s283, %s291
          %s293 = smul.addr %s24, 2
          %s294 = sadd.s32 %s25, %s293
          %s295 = smul.addr %s294, 64
          %s296 = scalar_lea.hbm %s2, %s295
          %s298 = sshll.u32 %s286, 4
          %s299 = int_to_ptr.vmem [resolvable:$true] %s298
          %301 = dma.vmem_to_hbm [thread:$0]  %s299, 64, %s296, %s283
        $region40: #{tpu_custom_call.1} parent=27 // pred_fallthru
          _
      $region28: #{tpu_custom_call.1} parent=5 // pred_fallthru
        _
      %p302 = scmp.le.s32.totalorder 2, %s15
      // Predicated region
      $region41: #{tpu_custom_call.1} parent=5 // pred_check
        %p303 = pneg %p302
      $region42: #{tpu_custom_call.1} parent=5 // pred_check_branch
        %305 = sbr.rel (%p303) target = $region44
      $region43: #{tpu_custom_call.1} parent=5 // pred_region
        %s306 = ssub.s32 %s15, 2
        // Predicated region
        $region45: #{tpu_custom_call.1} parent=43 // pred_check
          %p307 = pneg %p107
        $region46: #{tpu_custom_call.1} parent=43 // pred_check_branch
          %309 = sbr.rel (%p307) target = $region48
        $region47: #{tpu_custom_call.1} parent=43 // pred_region
          %s310 = sand.u32 %s92, 1
          %s311 = scalar_lea.sflag [#allocation4], %s310
          %s312 = sand.u32 %s92, 1
          %s313 = smul.addr %s312, 4
          %s314 = scalar_lea.vmem [#allocation7], %s313
          %315 = dma.done %s311, 64
        $region48: #{tpu_custom_call.1} parent=43 // pred_fallthru
          _
      $region44: #{tpu_custom_call.1} parent=5 // pred_fallthru
        _
    $region6: #{tpu_custom_call.1} parent=1 // loop_footer
      %s19 = sadd.s32 1, %s15
    $region7: #{tpu_custom_call.1} parent=1 // loop_footer_branch
      %14 = sbr.rel target = $region3
    $region8: #{tpu_custom_call.1} parent=1 // loop_exit
      _
    %316 = vsyncpa [#allocation3], 1
    %s317 = scalar_lea.sflag [#allocation3], 1
    %318 = vsyncpa %s317, 1
    %319 = vsyncpa [#allocation6], 1
    %s320 = scalar_lea.sflag [#allocation6], 1
    %321 = vsyncpa %s320, 1
    %322 = vsyncpa [#allocation4], 1
    %s323 = scalar_lea.sflag [#allocation4], 1
    %324 = vsyncpa %s323, 1

</llo_original>
